<compile_context>
chip_gen: v6e
topology: v6e:2x2x1
jax: 0.10.0
libtpu: 0.0.40
codegen_flags: <defaults>
</compile_context>

<pallas_src>
import numpy as np

import jax
import jax.numpy as jnp
from jax import lax
from jax.experimental import pallas as pl
from jax.experimental.pallas import tpu as pltpu

HORIZONS = [30, 180, 365, 730]
INDICATORS = ["market_sentiment", "sector_performance", "economic_health"]

# small, module-consistent config
D_MODEL = 32
HIDDEN = 16
HIDDEN2 = HIDDEN // 2
BATCH = 2
SEQ = 8

NH = len(HORIZONS)           # 4
NE = len(INDICATORS)         # 3
N_HEADS = 4 * NH + NE        # 19

# --- h1 (stacked layer-1 output) column layout, 16 cols per head ---
#   [  0: 64)  returns horizon heads
#   [ 64:128)  volatility heads
#   [128:192)  direction heads
#   [192:256)  returns uncertainty heads
#   [256:304)  economic heads
#   [304:512)  zero pad (MXU-width aligned)
N1_PAD = 512

# --- h2 (stacked layer-2 output) column layout, width 256 ---
#   [  0: 64)  returns-horizon hidden2   (4 x 16, ReLU)
#   [ 64: 96)  volatility hidden2        (4 x 8,  ReLU)
#   [ 96:128)  direction hidden2         (4 x 8,  ReLU)
#   [128:192)  returns-uncertainty h1 pass-through (identity block)
#   [192:240)  economic h1 pass-through  (identity block)
#   [240:256)  zero pad
N2 = 256

# --- packed output lane layout (single lane-dense (B, 128) store) ---
#   [ 0: 4)  returns predictions             (identity)
#   [ 4: 8)  returns uncertainties           (softplus)
#   [ 8:12)  volatility                      (softplus)
#   [12:24)  direction logits, class-major:  lane = 12 + 4*class + horizon
#   [24:36)  direction probabilities, same class-major layout
#   [36]     economic market_sentiment       (tanh)
#   [37:39)  economic sector/health          (sigmoid)
#   [39:128) zero pad
OUT_W = 128


def _vmem():
    return pl.BlockSpec(memory_space=pltpu.MemorySpace.VMEM)


# ----------------------------- the single fused kernel -----------------------------

def _fused_head_kernel(x_ref, wa_ref, ba_ref, g_ref, be_ref,
                       w1_ref, b1_ref, w2_ref, b2_ref, w3_ref, b3_ref,
                       o_ref):
    # ---- sequence aggregation: (last timestep + mean over seq) / 2 ----
    x = x_ref[...]                                       # [B, S, D] (f32, cast done by caller)
    agg = (x[:, -1, :] + jnp.mean(x, axis=1)) * 0.5      # [B, D]

    # ---- feature aggregator: Linear -> LayerNorm(eps=1e-5) -> ReLU (Dropout = identity) ----
    y = jnp.dot(agg, wa_ref[...], preferred_element_type=jnp.float32) + ba_ref[...]
    mu = jnp.mean(y, axis=-1, keepdims=True)
    var = jnp.mean(jnp.square(y - mu), axis=-1, keepdims=True)
    feat = jnp.maximum((y - mu) * lax.rsqrt(var + 1e-5) * g_ref[...] + be_ref[...], 0.0)

    # ---- layer 1 of all 19 heads: one stacked matmul + single bias broadcast ----
    h1 = jnp.maximum(
        jnp.dot(feat, w1_ref[...], preferred_element_type=jnp.float32) + b1_ref[...], 0.0)

    # ---- layer 2: block-diagonal (3-layer heads) + identity pass-through (2-layer heads) ----
    h2 = jnp.maximum(
        jnp.dot(h1, w2_ref[...], preferred_element_type=jnp.float32) + b2_ref[...], 0.0)

    # ---- final layer: one block matmul into the packed 128-lane pre-activation ----
    z = jnp.dot(h2, w3_ref[...], preferred_element_type=jnp.float32) + b3_ref[...]   # [B, 128]

    # per-lane activations via lane-index masks (identity elsewhere keeps logits / zero pad)
    lane = lax.broadcasted_iota(jnp.int32, z.shape, 1)
    sp = jnp.logaddexp(z, 0.0)            # softplus (matches torch.nn.Softplus, beta=1)
    th = jnp.tanh(z)
    sg = jax.nn.sigmoid(z)
    act = jnp.where((lane >= 4) & (lane < 12), sp, z)     # uncertainties + volatility
    act = jnp.where(lane == 36, th, act)                  # market_sentiment
    act = jnp.where((lane >= 37) & (lane < 39), sg, act)  # sector_performance / economic_health

    # direction softmax: class-major layout => purely elementwise over three 4-lane slices
    l0, l1, l2 = z[:, 12:16], z[:, 16:20], z[:, 20:24]
    m = jnp.maximum(jnp.maximum(l0, l1), l2)
    e0, e1, e2 = jnp.exp(l0 - m), jnp.exp(l1 - m), jnp.exp(l2 - m)
    inv = 1.0 / (e0 + e1 + e2)

    # single lane-dense store of the whole packed result
    o_ref[...] = jnp.concatenate(
        [act[:, :24], e0 * inv, e1 * inv, e2 * inv, act[:, 36:]], axis=-1)


# ----------------------------- parameter init (per-head, PyTorch-like) -----------------------------

def _linear(key, in_dim, out_dim):
    kw, kb = jax.random.split(key)
    bound = 1.0 / jnp.sqrt(jnp.float32(in_dim))
    w = jax.random.uniform(kw, (in_dim, out_dim), jnp.float32, -bound, bound)
    b = jax.random.uniform(kb, (1, out_dim), jnp.float32, -bound, bound)
    return w, b


def init_params(key):
    keys = iter(jax.random.split(key, 64))
    p = {}

    # feature_aggregator: Linear(D,D) + LayerNorm(D)
    w, b = _linear(next(keys), D_MODEL, D_MODEL)
    gamma = jnp.ones((1, D_MODEL), jnp.float32)
    beta = jnp.zeros((1, D_MODEL), jnp.float32)
    p["feature_aggregator"] = (w, b, gamma, beta)

    # returns head (use_separate_heads=True)
    p["returns"] = {"horizon_heads": {}, "uncertainty_heads": {}}
    for h in HORIZONS:
        k = f"horizon_{h}"
        w1, b1 = _linear(next(keys), D_MODEL, HIDDEN)
        w2, b2 = _linear(next(keys), HIDDEN, HIDDEN)
        w3, b3 = _linear(next(keys), HIDDEN, 1)
        p["returns"]["horizon_heads"][k] = (w1, b1, w2, b2, w3, b3)
        u1, ub1 = _linear(next(keys), D_MODEL, HIDDEN)
        u2, ub2 = _linear(next(keys), HIDDEN, 1)
        p["returns"]["uncertainty_heads"][k] = (u1, ub1, u2, ub2)

    # volatility head
    p["volatility"] = {}
    for h in HORIZONS:
        w1, b1 = _linear(next(keys), D_MODEL, HIDDEN)
        w2, b2 = _linear(next(keys), HIDDEN, HIDDEN2)
        w3, b3 = _linear(next(keys), HIDDEN2, 1)
        p["volatility"][f"horizon_{h}"] = (w1, b1, w2, b2, w3, b3)

    # direction head
    p["direction"] = {}
    for h in HORIZONS:
        w1, b1 = _linear(next(keys), D_MODEL, HIDDEN)
        w2, b2 = _linear(next(keys), HIDDEN, HIDDEN2)
        w3, b3 = _linear(next(keys), HIDDEN2, 3)
        p["direction"][f"horizon_{h}"] = (w1, b1, w2, b2, w3, b3)

    # economic head
    p["economic"] = {}
    for ind in INDICATORS:
        w1, b1 = _linear(next(keys), D_MODEL, HIDDEN)
        w2, b2 = _linear(next(keys), HIDDEN, 1)
        p["economic"][ind] = (w1, b1, w2, b2)

    # task weights (4 tasks), initialized to ones like nn.Parameter(torch.ones(n))
    p["task_weights"] = jnp.ones((4,), jnp.float32)
    return p


# ----------------------------- weight packing (stacked / block-diagonal) -----------------------------

def pack_params(p):
    f32 = np.float32
    w1 = np.zeros((D_MODEL, N1_PAD), f32)
    b1 = np.zeros((1, N1_PAD), f32)
    w2 = np.zeros((N1_PAD, N2), f32)
    b2 = np.zeros((1, N2), f32)
    w3 = np.zeros((N2, OUT_W), f32)
    b3 = np.zeros((1, OUT_W), f32)

    def put_l1(col, w, b):
        w1[:, col:col + HIDDEN] = np.asarray(w)
        b1[0, col:col + HIDDEN] = np.asarray(b)[0]

    # returns horizon heads (3-layer): h1 [0:64), h2 [0:64), out lane i
    for i, h in enumerate(HORIZONS):
        rw1, rb1, rw2, rb2, rw3, rb3 = p["returns"]["horizon_heads"][f"horizon_{h}"]
        c1 = 0 + HIDDEN * i
        c2 = 0 + HIDDEN * i
        put_l1(c1, rw1, rb1)
        w2[c1:c1 + HIDDEN, c2:c2 + HIDDEN] = np.asarray(rw2)
        b2[0, c2:c2 + HIDDEN] = np.asarray(rb2)[0]
        w3[c2:c2 + HIDDEN, i] = np.asarray(rw3)[:, 0]
        b3[0, i] = np.asarray(rb3)[0, 0]

    # volatility heads (3-layer): h1 [64:128), h2 [64:96), out lane 8+i
    for i, h in enumerate(HORIZONS):
        vw1, vb1, vw2, vb2, vw3, vb3 = p["volatility"][f"horizon_{h}"]
        c1 = 64 + HIDDEN * i
        c2 = 64 + HIDDEN2 * i
        put_l1(c1, vw1, vb1)
        w2[c1:c1 + HIDDEN, c2:c2 + HIDDEN2] = np.asarray(vw2)
        b2[0, c2:c2 + HIDDEN2] = np.asarray(vb2)[0]
        w3[c2:c2 + HIDDEN2, 8 + i] = np.asarray(vw3)[:, 0]
        b3[0, 8 + i] = np.asarray(vb3)[0, 0]

    # direction heads (3-layer): h1 [128:192), h2 [96:128), logits lane 12 + 4*class + i
    for i, h in enumerate(HORIZONS):
        dw1, db1, dw2, db2, dw3, db3 = p["direction"][f"horizon_{h}"]
        c1 = 128 + HIDDEN * i
        c2 = 96 + HIDDEN2 * i
        put_l1(c1, dw1, db1)
        w2[c1:c1 + HIDDEN, c2:c2 + HIDDEN2] = np.asarray(dw2)
        b2[0, c2:c2 + HIDDEN2] = np.asarray(db2)[0]
        for c in range(3):
            w3[c2:c2 + HIDDEN2, 12 + 4 * c + i] = np.asarray(dw3)[:, c]
            b3[0, 12 + 4 * c + i] = np.asarray(db3)[0, c]

    # returns uncertainty heads (2-layer): h1 [192:256) -> identity to h2 [128:192), out lane 4+i
    for i, h in enumerate(HORIZONS):
        uw1, ub1, uw2, ub2 = p["returns"]["uncertainty_heads"][f"horizon_{h}"]
        c1 = 192 + HIDDEN * i
        c2 = 128 + HIDDEN * i
        put_l1(c1, uw1, ub1)
        w2[c1:c1 + HIDDEN, c2:c2 + HIDDEN] = np.eye(HIDDEN, dtype=f32)   # ReLU no-op: h1 >= 0
        w3[c2:c2 + HIDDEN, 4 + i] = np.asarray(uw2)[:, 0]
        b3[0, 4 + i] = np.asarray(ub2)[0, 0]

    # economic heads (2-layer): h1 [256:304) -> identity to h2 [192:240), out lane 36+j
    for j, ind in enumerate(INDICATORS):
        ew1, eb1, ew2, eb2 = p["economic"][ind]
        c1 = 256 + HIDDEN * j
        c2 = 192 + HIDDEN * j
        put_l1(c1, ew1, eb1)
        w2[c1:c1 + HIDDEN, c2:c2 + HIDDEN] = np.eye(HIDDEN, dtype=f32)
        w3[c2:c2 + HIDDEN, 36 + j] = np.asarray(ew2)[:, 0]
        b3[0, 36 + j] = np.asarray(eb2)[0, 0]

    wa, ba, g, be = p["feature_aggregator"]
    return {
        "w_agg": jnp.asarray(wa), "b_agg": jnp.asarray(ba),
        "gamma": jnp.asarray(g), "beta": jnp.asarray(be),
        "w1": jnp.asarray(w1), "b1": jnp.asarray(b1),
        "w2": jnp.asarray(w2), "b2": jnp.asarray(b2),
        "w3": jnp.asarray(w3), "b3": jnp.asarray(b3),
        "task_weights": p["task_weights"],
    }


# ----------------------------- forward -----------------------------

def multi_task_forward(params, sequence_features):
    # TODO(synk): Dropout layers are identity here (inference mode), matching module.eval().
    x = sequence_features.astype(jnp.float32)
    if x.ndim == 2:
        x = x[:, None, :]       # with seq_len == 1, (last + mean)/2 == x exactly
    B = x.shape[0]

    packed = pl.pallas_call(
        _fused_head_kernel,
        out_shape=jax.ShapeDtypeStruct((B, OUT_W), jnp.float32),
        in_specs=[_vmem()] * 11,
        out_specs=_vmem(),
    )(x, params["w_agg"], params["b_agg"], params["gamma"], params["beta"],
      params["w1"], params["b1"], params["w2"], params["b2"],
      params["w3"], params["b3"])

    # host-side unpacking of the single lane-dense output (cheap slices / reshape, plain JAX)
    out = {}
    preds = {f"horizon_{h}": packed[:, i] for i, h in enumerate(HORIZONS)}
    uncs = {f"horizon_{h}": packed[:, 4 + i] for i, h in enumerate(HORIZONS)}
    out["returns"] = {"predictions": preds, "uncertainties": uncs}
    out["volatility"] = {f"horizon_{h}": packed[:, 8 + i] for i, h in enumerate(HORIZONS)}

    dir_logits = packed[:, 12:24].reshape(B, 3, NH)   # [batch, class, horizon]
    dir_probs = packed[:, 24:36].reshape(B, 3, NH)
    out["direction"] = {
        f"horizon_{h}": {"logits": dir_logits[:, :, i], "probabilities": dir_probs[:, :, i]}
        for i, h in enumerate(HORIZONS)
    }
    out["economic"] = {ind: packed[:, 36 + j] for j, ind in enumerate(INDICATORS)}

    tw = jax.nn.softmax(params["task_weights"], axis=0)
    out["task_weights"] = {
        name: tw[i] for i, name in enumerate(["returns", "volatility", "direction", "economic"])
    }
    return out


# ----------------------------- pure-JAX reference (for correctness check only) -----------------------------

def _act(y, name):
    if name == "none":
        return y
    if name == "relu":
        return jnp.maximum(y, 0.0)
    if name == "softplus":
        return jnp.logaddexp(y, 0.0)
    if name == "tanh":
        return jnp.tanh(y)
    if name == "sigmoid":
        return jax.nn.sigmoid(y)
    raise ValueError(name)


def reference_forward(raw, x):
    x = x.astype(jnp.float32)
    agg = (x[:, -1, :] + x.mean(axis=1)) * 0.5
    w, b, g, be = raw["feature_aggregator"]
    y = agg @ w + b
    mu = y.mean(-1, keepdims=True)
    var = ((y - mu) ** 2).mean(-1, keepdims=True)
    feat = jnp.maximum((y - mu) / jnp.sqrt(var + 1e-5) * g + be, 0.0)

    def mlp(f, layers, acts):
        h = f
        for (w_, b_), a in zip(layers, acts):
            h = _act(h @ w_ + b_, a)
        return h

    out = {"returns": {"predictions": {}, "uncertainties": {}}, "volatility": {},
           "direction": {}, "economic": {}}
    for h in HORIZONS:
        k = f"horizon_{h}"
        w1, b1, w2, b2, w3, b3 = raw["returns"]["horizon_heads"][k]
        out["returns"]["predictions"][k] = mlp(
            feat, [(w1, b1), (w2, b2), (w3, b3)], ["relu", "relu", "none"])[:, 0]
        u1, ub1, u2, ub2 = raw["returns"]["uncertainty_heads"][k]
        out["returns"]["uncertainties"][k] = mlp(
            feat, [(u1, ub1), (u2, ub2)], ["relu", "softplus"])[:, 0]
        v1, vb1, v2, vb2, v3, vb3 = raw["volatility"][k]
        out["volatility"][k] = mlp(
            feat, [(v1, vb1), (v2, vb2), (v3, vb3)], ["relu", "relu", "softplus"])[:, 0]
        d1, db1, d2, db2, d3, db3 = raw["direction"][k]
        logits = mlp(feat, [(d1, db1), (d2, db2), (d3, db3)], ["relu", "relu", "none"])
        out["direction"][k] = {"logits": logits, "probabilities": jax.nn.softmax(logits, axis=-1)}
    acts = {"market_sentiment": "tanh", "sector_performance": "sigmoid", "economic_health": "sigmoid"}
    for ind in INDICATORS:
        e1, eb1, e2, eb2 = raw["economic"][ind]
        out["economic"][ind] = mlp(feat, [(e1, eb1), (e2, eb2)], ["relu", acts[ind]])[:, 0]
    return out


if __name__ == "__main__":
    root = jax.random.PRNGKey(0)
    k_param, k_data = jax.random.split(root)
    raw = init_params(k_param)
    params = pack_params(raw)

    # sequence_features: [batch, seq_len, d_model]
    x = jax.random.normal(k_data, (BATCH, SEQ, D_MODEL), jnp.float32)

    fwd = jax.jit(multi_task_forward)
    out = fwd(params, x)
    out = jax.tree_util.tree_map(jax.block_until_ready, out)

    # correctness vs. pure-JAX reference of the original module semantics
    ref = reference_forward(raw, x)

    def close(a, b):
        return bool(jnp.allclose(a, b, atol=1e-3, rtol=1e-3))

    for h in HORIZONS:
        k = f"horizon_{h}"
        assert close(out["returns"]["predictions"][k], ref["returns"]["predictions"][k])
        assert close(out["returns"]["uncertainties"][k], ref["returns"]["uncertainties"][k])
        assert close(out["volatility"][k], ref["volatility"][k])
        assert close(out["direction"][k]["logits"], ref["direction"][k]["logits"])
        assert close(out["direction"][k]["probabilities"], ref["direction"][k]["probabilities"])
    for ind in INDICATORS:
        assert close(out["economic"][ind], ref["economic"][ind])

    # structural sanity checks
    assert out["returns"]["predictions"]["horizon_30"].shape == (BATCH,)
    assert out["direction"]["horizon_365"]["probabilities"].shape == (BATCH, 3)
    assert bool(jnp.all(out["volatility"]["horizon_730"] >= 0.0))
    probs_sum = jnp.sum(out["direction"]["horizon_30"]["probabilities"], axis=-1)
    assert bool(jnp.allclose(probs_sum, 1.0, atol=1e-5))

    print("KERNEL_OK")
</pallas_src>

<mosaic_0001>
module attributes {stable_mosaic.version = 11 : i64} {
  func.func @_fused_head_kernel(%arg0: memref<2x8x32xf32, #tpu.memory_space<vmem>>, %arg1: memref<32x32xf32, #tpu.memory_space<vmem>>, %arg2: memref<1x32xf32, #tpu.memory_space<vmem>>, %arg3: memref<1x32xf32, #tpu.memory_space<vmem>>, %arg4: memref<1x32xf32, #tpu.memory_space<vmem>>, %arg5: memref<32x512xf32, #tpu.memory_space<vmem>>, %arg6: memref<1x512xf32, #tpu.memory_space<vmem>>, %arg7: memref<512x256xf32, #tpu.memory_space<vmem>>, %arg8: memref<1x256xf32, #tpu.memory_space<vmem>>, %arg9: memref<256x128xf32, #tpu.memory_space<vmem>>, %arg10: memref<1x128xf32, #tpu.memory_space<vmem>>, %arg11: memref<2x128xf32, #tpu.memory_space<vmem>>) attributes {dimension_semantics = [], scalar_prefetch = 0 : i64, scratch_operands = 0 : i64, tpu.core_type = #tpu.core_type<tc>} {
    %c0 = arith.constant 0 : index
    %c0_0 = arith.constant 0 : index
    %c0_1 = arith.constant 0 : index
    %0 = vector.load %arg0[%c0, %c0_0, %c0_1] : memref<2x8x32xf32, #tpu.memory_space<vmem>>, vector<2x8x32xf32>
    %1 = vector.extract_strided_slice %0 {offsets = [0, 7, 0], sizes = [2, 1, 32], strides = [1, 1, 1]} : vector<2x8x32xf32> to vector<2x1x32xf32>
    %2 = vector.shape_cast %1 : vector<2x1x32xf32> to vector<2x32xf32>
    %cst = arith.constant dense<0.000000e+00> : vector<2x32xf32>
    %3 = vector.multi_reduction <add>, %0, %cst [1] : vector<2x8x32xf32> to vector<2x32xf32>
    %cst_2 = arith.constant 8.000000e+00 : f32
    %4 = vector.broadcast %cst_2 : f32 to vector<2x32xf32>
    %5 = arith.divf %3, %4 : vector<2x32xf32>
    %6 = arith.addf %2, %5 : vector<2x32xf32>
    %cst_3 = arith.constant 5.000000e-01 : f32
    %7 = vector.broadcast %cst_3 : f32 to vector<2x32xf32>
    %8 = arith.mulf %6, %7 : vector<2x32xf32>
    %c0_4 = arith.constant 0 : index
    %c0_5 = arith.constant 0 : index
    %9 = vector.load %arg1[%c0_4, %c0_5] : memref<32x32xf32, #tpu.memory_space<vmem>>, vector<32x32xf32>
    %cst_6 = arith.constant dense<0.000000e+00> : vector<2x32xf32>
    %10 = tpu.matmul %8, %9, %cst_6 {dimension_numbers = #tpu.dot_dimension_numbers<[1], [0], [0], [1], [0, 0, 1, 1], [], []>} : vector<2x32xf32>, vector<32x32xf32>, vector<2x32xf32> -> vector<2x32xf32>
    %c0_7 = arith.constant 0 : index
    %c0_8 = arith.constant 0 : index
    %11 = vector.load %arg2[%c0_7, %c0_8] : memref<1x32xf32, #tpu.memory_space<vmem>>, vector<1x32xf32>
    %12 = vector.broadcast %11 : vector<1x32xf32> to vector<2x32xf32>
    %13 = arith.addf %10, %12 : vector<2x32xf32>
    %cst_9 = arith.constant dense<0.000000e+00> : vector<2xf32>
    %14 = vector.multi_reduction <add>, %13, %cst_9 [1] : vector<2x32xf32> to vector<2xf32>
    %15 = vector.shape_cast %14 : vector<2xf32> to vector<2x1xf32>
    %cst_10 = arith.constant 3.200000e+01 : f32
    %16 = vector.broadcast %cst_10 : f32 to vector<2x1xf32>
    %17 = arith.divf %15, %16 : vector<2x1xf32>
    %18 = vector.broadcast %17 : vector<2x1xf32> to vector<2x32xf32>
    %19 = arith.subf %13, %18 : vector<2x32xf32>
    %20 = arith.mulf %19, %19 : vector<2x32xf32>
    %cst_11 = arith.constant dense<0.000000e+00> : vector<2xf32>
    %21 = vector.multi_reduction <add>, %20, %cst_11 [1] : vector<2x32xf32> to vector<2xf32>
    %22 = vector.shape_cast %21 : vector<2xf32> to vector<2x1xf32>
    %cst_12 = arith.constant 3.200000e+01 : f32
    %23 = vector.broadcast %cst_12 : f32 to vector<2x1xf32>
    %24 = arith.divf %22, %23 : vector<2x1xf32>
    %25 = vector.broadcast %17 : vector<2x1xf32> to vector<2x32xf32>
    %26 = arith.subf %13, %25 : vector<2x32xf32>
    %cst_13 = arith.constant 9.99999974E-6 : f32
    %27 = vector.broadcast %cst_13 : f32 to vector<2x1xf32>
    %28 = arith.addf %24, %27 : vector<2x1xf32>
    %29 = math.rsqrt %28 : vector<2x1xf32>
    %30 = vector.broadcast %29 : vector<2x1xf32> to vector<2x32xf32>
    %31 = arith.mulf %26, %30 : vector<2x32xf32>
    %c0_14 = arith.constant 0 : index
    %c0_15 = arith.constant 0 : index
    %32 = vector.load %arg3[%c0_14, %c0_15] : memref<1x32xf32, #tpu.memory_space<vmem>>, vector<1x32xf32>
    %33 = vector.broadcast %32 : vector<1x32xf32> to vector<2x32xf32>
    %34 = arith.mulf %31, %33 : vector<2x32xf32>
    %c0_16 = arith.constant 0 : index
    %c0_17 = arith.constant 0 : index
    %35 = vector.load %arg4[%c0_16, %c0_17] : memref<1x32xf32, #tpu.memory_space<vmem>>, vector<1x32xf32>
    %36 = vector.broadcast %35 : vector<1x32xf32> to vector<2x32xf32>
    %37 = arith.addf %34, %36 : vector<2x32xf32>
    %cst_18 = arith.constant 0.000000e+00 : f32
    %38 = vector.broadcast %cst_18 : f32 to vector<2x32xf32>
    %39 = arith.maximumf %37, %38 : vector<2x32xf32>
    %c0_19 = arith.constant 0 : index
    %c0_20 = arith.constant 0 : index
    %40 = vector.load %arg5[%c0_19, %c0_20] : memref<32x512xf32, #tpu.memory_space<vmem>>, vector<32x512xf32>
    %cst_21 = arith.constant dense<0.000000e+00> : vector<2x512xf32>
    %41 = tpu.matmul %39, %40, %cst_21 {dimension_numbers = #tpu.dot_dimension_numbers<[1], [0], [0], [1], [0, 0, 1, 1], [], []>} : vector<2x32xf32>, vector<32x512xf32>, vector<2x512xf32> -> vector<2x512xf32>
    %c0_22 = arith.constant 0 : index
    %c0_23 = arith.constant 0 : index
    %42 = vector.load %arg6[%c0_22, %c0_23] : memref<1x512xf32, #tpu.memory_space<vmem>>, vector<1x512xf32>
    %43 = vector.broadcast %42 : vector<1x512xf32> to vector<2x512xf32>
    %44 = arith.addf %41, %43 : vector<2x512xf32>
    %cst_24 = arith.constant 0.000000e+00 : f32
    %45 = vector.broadcast %cst_24 : f32 to vector<2x512xf32>
    %46 = arith.maximumf %44, %45 : vector<2x512xf32>
    %c0_25 = arith.constant 0 : index
    %c0_26 = arith.constant 0 : index
    %47 = vector.load %arg7[%c0_25, %c0_26] : memref<512x256xf32, #tpu.memory_space<vmem>>, vector<512x256xf32>
    %cst_27 = arith.constant dense<0.000000e+00> : vector<2x256xf32>
    %48 = tpu.matmul %46, %47, %cst_27 {dimension_numbers = #tpu.dot_dimension_numbers<[1], [0], [0], [1], [0, 0, 1, 1], [], []>} : vector<2x512xf32>, vector<512x256xf32>, vector<2x256xf32> -> vector<2x256xf32>
    %c0_28 = arith.constant 0 : index
    %c0_29 = arith.constant 0 : index
    %49 = vector.load %arg8[%c0_28, %c0_29] : memref<1x256xf32, #tpu.memory_space<vmem>>, vector<1x256xf32>
    %50 = vector.broadcast %49 : vector<1x256xf32> to vector<2x256xf32>
    %51 = arith.addf %48, %50 : vector<2x256xf32>
    %cst_30 = arith.constant 0.000000e+00 : f32
    %52 = vector.broadcast %cst_30 : f32 to vector<2x256xf32>
    %53 = arith.maximumf %51, %52 : vector<2x256xf32>
    %c0_31 = arith.constant 0 : index
    %c0_32 = arith.constant 0 : index
    %54 = vector.load %arg9[%c0_31, %c0_32] : memref<256x128xf32, #tpu.memory_space<vmem>>, vector<256x128xf32>
    %cst_33 = arith.constant dense<0.000000e+00> : vector<2x128xf32>
    %55 = tpu.matmul %53, %54, %cst_33 {dimension_numbers = #tpu.dot_dimension_numbers<[1], [0], [0], [1], [0, 0, 1, 1], [], []>} : vector<2x256xf32>, vector<256x128xf32>, vector<2x128xf32> -> vector<2x128xf32>
    %c0_34 = arith.constant 0 : index
    %c0_35 = arith.constant 0 : index
    %56 = vector.load %arg10[%c0_34, %c0_35] : memref<1x128xf32, #tpu.memory_space<vmem>>, vector<1x128xf32>
    %57 = vector.broadcast %56 : vector<1x128xf32> to vector<2x128xf32>
    %58 = arith.addf %55, %57 : vector<2x128xf32>
    %59 = tpu.iota {dimensions = array<i32: 1>} : vector<2x128xi32>
    %cst_36 = arith.constant 0.000000e+00 : f32
    %60 = vector.broadcast %cst_36 : f32 to vector<2x128xf32>
    %61 = arith.maximumf %58, %60 : vector<2x128xf32>
    %62 = vector.broadcast %cst_36 : f32 to vector<2x128xf32>
    %63 = arith.subf %58, %62 : vector<2x128xf32>
    %64 = arith.cmpf one, %63, %63 : vector<2x128xf32>
    %65 = vector.broadcast %cst_36 : f32 to vector<2x128xf32>
    %66 = arith.addf %58, %65 : vector<2x128xf32>
    %67 = math.absf %63 : vector<2x128xf32>
    %cst_37 = arith.constant 0.000000e+00 : f32
    %68 = vector.broadcast %cst_37 : f32 to vector<2x128xf32>
    %69 = arith.subf %68, %67 : vector<2x128xf32>
    %70 = math.exp %69 : vector<2x128xf32>
    %71 = math.log1p %70 : vector<2x128xf32>
    %72 = arith.addf %61, %71 : vector<2x128xf32>
    %73 = arith.select %64, %66, %72 : vector<2x128xi1>, vector<2x128xf32>
    %74 = math.tanh %58 : vector<2x128xf32>
    %75 = arith.negf %58 : vector<2x128xf32>
    %76 = math.exp %75 : vector<2x128xf32>
    %cst_38 = arith.constant 1.000000e+00 : f32
    %77 = vector.broadcast %cst_38 : f32 to vector<2x128xf32>
    %78 = arith.addf %77, %76 : vector<2x128xf32>
    %79 = arith.divf %77, %78 : vector<2x128xf32>
    %c4_i32 = arith.constant 4 : i32
    %80 = vector.broadcast %c4_i32 : i32 to vector<2x128xi32>
    %81 = arith.cmpi sge, %59, %80 : vector<2x128xi32>
    %c12_i32 = arith.constant 12 : i32
    %82 = vector.broadcast %c12_i32 : i32 to vector<2x128xi32>
    %83 = arith.cmpi slt, %59, %82 : vector<2x128xi32>
    %84 = arith.andi %81, %83 : vector<2x128xi1>
    %85 = arith.select %84, %73, %58 : vector<2x128xi1>, vector<2x128xf32>
    %c36_i32 = arith.constant 36 : i32
    %86 = vector.broadcast %c36_i32 : i32 to vector<2x128xi32>
    %87 = arith.cmpi eq, %59, %86 : vector<2x128xi32>
    %88 = arith.select %87, %74, %85 : vector<2x128xi1>, vector<2x128xf32>
    %c37_i32 = arith.constant 37 : i32
    %89 = vector.broadcast %c37_i32 : i32 to vector<2x128xi32>
    %90 = arith.cmpi sge, %59, %89 : vector<2x128xi32>
    %c39_i32 = arith.constant 39 : i32
    %91 = vector.broadcast %c39_i32 : i32 to vector<2x128xi32>
    %92 = arith.cmpi slt, %59, %91 : vector<2x128xi32>
    %93 = arith.andi %90, %92 : vector<2x128xi1>
    %94 = arith.select %93, %79, %88 : vector<2x128xi1>, vector<2x128xf32>
    %95 = vector.extract_strided_slice %58 {offsets = [0, 12], sizes = [2, 4], strides = [1, 1]} : vector<2x128xf32> to vector<2x4xf32>
    %96 = vector.extract_strided_slice %58 {offsets = [0, 16], sizes = [2, 4], strides = [1, 1]} : vector<2x128xf32> to vector<2x4xf32>
    %97 = vector.extract_strided_slice %58 {offsets = [0, 20], sizes = [2, 4], strides = [1, 1]} : vector<2x128xf32> to vector<2x4xf32>
    %98 = arith.maximumf %95, %96 : vector<2x4xf32>
    %99 = arith.maximumf %98, %97 : vector<2x4xf32>
    %100 = arith.subf %95, %99 : vector<2x4xf32>
    %101 = math.exp %100 : vector<2x4xf32>
    %102 = arith.subf %96, %99 : vector<2x4xf32>
    %103 = math.exp %102 : vector<2x4xf32>
    %104 = arith.subf %97, %99 : vector<2x4xf32>
    %105 = math.exp %104 : vector<2x4xf32>
    %106 = arith.addf %101, %103 : vector<2x4xf32>
    %107 = arith.addf %106, %105 : vector<2x4xf32>
    %cst_39 = arith.constant 1.000000e+00 : f32
    %108 = vector.broadcast %cst_39 : f32 to vector<2x4xf32>
    %109 = arith.divf %108, %107 : vector<2x4xf32>
    %110 = vector.extract_strided_slice %94 {offsets = [0, 0], sizes = [2, 24], strides = [1, 1]} : vector<2x128xf32> to vector<2x24xf32>
    %111 = arith.mulf %101, %109 : vector<2x4xf32>
    %112 = arith.mulf %103, %109 : vector<2x4xf32>
    %113 = arith.mulf %105, %109 : vector<2x4xf32>
    %114 = vector.extract_strided_slice %94 {offsets = [0, 36], sizes = [2, 92], strides = [1, 1]} : vector<2x128xf32> to vector<2x92xf32>
    %115 = tpu.concatenate %110, %111, %112, %113, %114 in 1 : vector<2x24xf32>, vector<2x4xf32>, vector<2x4xf32>, vector<2x4xf32>, vector<2x92xf32> -> vector<2x128xf32>
    %c0_40 = arith.constant 0 : index
    %c0_41 = arith.constant 0 : index
    %116 = vector.load %arg11[%c0_40, %c0_41] : memref<2x128xf32, #tpu.memory_space<vmem>>, vector<2x128xf32>
    tpu.vector_store %arg11[%c0_40, %c0_41], %115 {strides = array<i32>} : memref<2x128xf32, #tpu.memory_space<vmem>>, vector<2x128xf32>,
    return
  }
}

</mosaic_0001>

<llo_original>
// kernel: multi_task_forward.1
$region0: #{multi_task_forward.1}
  #allocation0 [shape = 'u32[]', space=smem, size = 0x4, offset = 0x4, fixed_abs, tag = 'smem constant byte address 0x4 - core index']
  #allocation1 [shape = 'u32[144,128]{1,0:T(1,128)}', space=vmem, size = 0x12000, scoped, tag = 'internal scratch']
  %s0 = inlined_call_operand.vmem [shape: f32[2,8,32], index: 0, kind: input, shape index: {}]
  %s1 = inlined_call_operand.hbm [shape: f32[32,32], index: 1, kind: input, shape index: {}]
  %s2 = inlined_call_operand.hbm [shape: f32[1,32], index: 2, kind: input, shape index: {}]
  %s3 = inlined_call_operand.hbm [shape: f32[1,32], index: 3, kind: input, shape index: {}]
  %s4 = inlined_call_operand.hbm [shape: f32[1,32], index: 4, kind: input, shape index: {}]
  %s5 = inlined_call_operand.hbm [shape: f32[32,512], index: 5, kind: input, shape index: {}]
  %s6 = inlined_call_operand.vmem [shape: f32[1,512], index: 6, kind: input, shape index: {}]
  %s7 = inlined_call_operand.hbm [shape: f32[512,256], index: 7, kind: input, shape index: {}]
  %s8 = inlined_call_operand.hbm [shape: f32[1,256], index: 8, kind: input, shape index: {}]
  %s9 = inlined_call_operand.hbm [shape: f32[256,128], index: 9, kind: input, shape index: {}]
  %s10 = inlined_call_operand.hbm [shape: f32[1,128], index: 10, kind: input, shape index: {}]
  %s11 = inlined_call_operand.vmem [shape: f32[2,128], index: 11, kind: output, shape index: {}]
  %s12 = sld [smem:[#allocation0]]
  $region90: #{multi_task_forward.1} parent=0
    _
  %s14 = ssub.s32 1, %s12
  %s15 = scalar_select 0, %s14, %s12
  $region1: #{multi_task_forward.1} parent=0
    #allocation2 [shape = 'u8[16384]{0}', space=vmem, size = 0x4000, scoped, tag = 'input window, operand 1, single buffered']
    #allocation3 [shape = 's32[1]{0}', space=sflag, size = 0x4, scoped, tag = 'scoped memory for multi_task_forward.1']
    #allocation4 [shape = 'u8[512]{0}', space=vmem, size = 0x400, scoped, tag = 'input window, operand 2, single buffered']
    #allocation5 [shape = 's32[1]{0}', space=sflag, size = 0x4, scoped, tag = 'scoped memory for multi_task_forward.1']
    #allocation6 [shape = 'u8[512]{0}', space=vmem, size = 0x400, scoped, tag = 'input window, operand 3, single buffered']
    #allocation7 [shape = 'u8[512]{0}', space=vmem, size = 0x400, scoped, tag = 'input window, operand 4, single buffered']
    #allocation8 [shape = 's32[1]{0}', space=sflag, size = 0x4, scoped, tag = 'scoped memory for multi_task_forward.1']
    #allocation9 [shape = 'u8[65536]{0}', space=vmem, size = 0x10000, scoped, tag = 'input window, operand 5, single buffered']
    #allocation10 [shape = 'u8[524288]{0}', space=vmem, size = 0x80000, scoped, tag = 'input window, operand 7, single buffered']
    #allocation11 [shape = 's32[1]{0}', space=sflag, size = 0x4, scoped, tag = 'scoped memory for multi_task_forward.1']
    #allocation12 [shape = 'u8[1024]{0}', space=vmem, size = 0x400, scoped, tag = 'input window, operand 8, single buffered']
    #allocation13 [shape = 'u8[131072]{0}', space=vmem, size = 0x20000, scoped, tag = 'input window, operand 9, single buffered']
    #allocation14 [shape = 's32[1]{0}', space=sflag, size = 0x4, scoped, tag = 'scoped memory for multi_task_forward.1']
    #allocation15 [shape = 'u8[512]{0}', space=vmem, size = 0x400, scoped, tag = 'input window, operand 10, single buffered']
    %16 = vsyncpa [#allocation3], 0
    %17 = vsyncpa [#allocation5], 0
    %18 = vsyncpa [#allocation8], 0
    %19 = vsyncpa [#allocation11], 0
    %20 = vsyncpa [#allocation14], 0
    // Predicated region
    $region2: #{multi_task_forward.1} parent=1 // pred_check
      _
    $region3: #{multi_task_forward.1} parent=1 // pred_check_branch
      %22 = sbr.rel (0) target = $region5
    $region4: #{multi_task_forward.1} parent=1 // pred_region
      _
    $region5: #{multi_task_forward.1} parent=1 // pred_fallthru
      _
    // Predicated region
    $region6: #{multi_task_forward.1} parent=1 // pred_check
      _
    $region7: #{multi_task_forward.1} parent=1 // pred_check_branch
      %24 = sbr.rel (0) target = $region9
    $region8: #{multi_task_forward.1} parent=1 // pred_region
      %s26 = ssub.s32 512, 512
      %27 = vsyncadd [#allocation3], %s26
      %s28 = sshll.u32 [#allocation2], 4
      %s29 = int_to_ptr.vmem [resolvable:$true] %s28
      %34 = dma.hbm_to_vmem [thread:$0]  %s1, 512, %s29, [#allocation3], 128, 128, 8
    $region9: #{multi_task_forward.1} parent=1 // pred_fallthru
      _
    // Predicated region
    $region10: #{multi_task_forward.1} parent=1 // pred_check
      _
    $region11: #{multi_task_forward.1} parent=1 // pred_check_branch
      %36 = sbr.rel (0) target = $region13
    $region12: #{multi_task_forward.1} parent=1 // pred_region
      %s38 = ssub.s32 16, 16
      %39 = vsyncadd [#allocation5], %s38
      %s41 = sshll.u32 [#allocation4], 4
      %s42 = int_to_ptr.vmem [resolvable:$true] %s41
      %44 = dma.hbm_to_vmem [thread:$0]  %s2, 16, %s42, [#allocation5]
    $region13: #{multi_task_forward.1} parent=1 // pred_fallthru
      _
    // Predicated region
    $region14: #{multi_task_forward.1} parent=1 // pred_check
      _
    $region15: #{multi_task_forward.1} parent=1 // pred_check_branch
      %46 = sbr.rel (0) target = $region17
    $region16: #{multi_task_forward.1} parent=1 // pred_region
      %s48 = ssub.s32 16, 16
      %49 = vsyncadd [#allocation5], %s48
      %s51 = sshll.u32 [#allocation6], 4
      %s52 = int_to_ptr.vmem [resolvable:$true] %s51
      %54 = dma.hbm_to_vmem [thread:$0]  %s3, 16, %s52, [#allocation5]
    $region17: #{multi_task_forward.1} parent=1 // pred_fallthru
      _
    // Predicated region
    $region18: #{multi_task_forward.1} parent=1 // pred_check
      _
    $region19: #{multi_task_forward.1} parent=1 // pred_check_branch
      %56 = sbr.rel (0) target = $region21
    $region20: #{multi_task_forward.1} parent=1 // pred_region
      %s58 = ssub.s32 16, 16
      %59 = vsyncadd [#allocation8], %s58
      %s61 = sshll.u32 [#allocation7], 4
      %s62 = int_to_ptr.vmem [resolvable:$true] %s61
      %64 = dma.hbm_to_vmem [thread:$0]  %s4, 16, %s62, [#allocation8]
    $region21: #{multi_task_forward.1} parent=1 // pred_fallthru
      _
    // Predicated region
    $region22: #{multi_task_forward.1} parent=1 // pred_check
      _
    $region23: #{multi_task_forward.1} parent=1 // pred_check_branch
      %66 = sbr.rel (0) target = $region25
    $region24: #{multi_task_forward.1} parent=1 // pred_region
      %s68 = ssub.s32 2048, 2048
      %69 = vsyncadd [#allocation8], %s68
      %s70 = sshll.u32 [#allocation9], 4
      %s71 = int_to_ptr.vmem [resolvable:$true] %s70
      %76 = dma.hbm_to_vmem [thread:$0]  %s5, 2048, %s71, [#allocation8], 512, 512, 32
    $region25: #{multi_task_forward.1} parent=1 // pred_fallthru
      _
    // Predicated region
    $region26: #{multi_task_forward.1} parent=1 // pred_check
      _
    $region27: #{multi_task_forward.1} parent=1 // pred_check_branch
      %78 = sbr.rel (0) target = $region29
    $region28: #{multi_task_forward.1} parent=1 // pred_region
      _
    $region29: #{multi_task_forward.1} parent=1 // pred_fallthru
      _
    // Predicated region
    $region30: #{multi_task_forward.1} parent=1 // pred_check
      _
    $region31: #{multi_task_forward.1} parent=1 // pred_check_branch
      %80 = sbr.rel (0) target = $region33
    $region32: #{multi_task_forward.1} parent=1 // pred_region
      %s82 = ssub.s32 16384, 16384
      %83 = vsyncadd [#allocation11], %s82
      %s84 = sshll.u32 [#allocation10], 4
      %s85 = int_to_ptr.vmem [resolvable:$true] %s84
      %90 = dma.hbm_to_vmem [thread:$0]  %s7, 16384, %s85, [#allocation11], 256, 256, 16
    $region33: #{multi_task_forward.1} parent=1 // pred_fallthru
      _
    // Predicated region
    $region34: #{multi_task_forward.1} parent=1 // pred_check
      _
    $region35: #{multi_task_forward.1} parent=1 // pred_check_branch
      %92 = sbr.rel (0) target = $region37
    $region36: #{multi_task_forward.1} parent=1 // pred_region
      %s94 = ssub.s32 32, 32
      %95 = vsyncadd [#allocation11], %s94
      %s97 = sshll.u32 [#allocation12], 4
      %s98 = int_to_ptr.vmem [resolvable:$true] %s97
      %100 = dma.hbm_to_vmem [thread:$0]  %s8, 32, %s98, [#allocation11]
    $region37: #{multi_task_forward.1} parent=1 // pred_fallthru
      _
    // Predicated region
    $region38: #{multi_task_forward.1} parent=1 // pred_check
      _
    $region39: #{multi_task_forward.1} parent=1 // pred_check_branch
      %102 = sbr.rel (0) target = $region41
    $region40: #{multi_task_forward.1} parent=1 // pred_region
      %s104 = ssub.s32 4096, 4096
      %105 = vsyncadd [#allocation14], %s104
      %s106 = sshll.u32 [#allocation13], 4
      %s107 = int_to_ptr.vmem [resolvable:$true] %s106
      %112 = dma.hbm_to_vmem [thread:$0]  %s9, 4096, %s107, [#allocation14], 128, 128, 8
    $region41: #{multi_task_forward.1} parent=1 // pred_fallthru
      _
    // Predicated region
    $region42: #{multi_task_forward.1} parent=1 // pred_check
      _
    $region43: #{multi_task_forward.1} parent=1 // pred_check_branch
      %114 = sbr.rel (0) target = $region45
    $region44: #{multi_task_forward.1} parent=1 // pred_region
      %s116 = ssub.s32 16, 16
      %117 = vsyncadd [#allocation14], %s116
      %s119 = sshll.u32 [#allocation15], 4
      %s120 = int_to_ptr.vmem [resolvable:$true] %s119
      %122 = dma.hbm_to_vmem [thread:$0]  %s10, 16, %s120, [#allocation14]
    $region45: #{multi_task_forward.1} parent=1 // pred_fallthru
      _
    // Predicated region
    $region46: #{multi_task_forward.1} parent=1 // pred_check
      _
    $region47: #{multi_task_forward.1} parent=1 // pred_check_branch
      %124 = sbr.rel (0) target = $region49
    $region48: #{multi_task_forward.1} parent=1 // pred_region
      %125 = dma.done [#allocation3], 512
    $region49: #{multi_task_forward.1} parent=1 // pred_fallthru
      _
    // Predicated region
    $region50: #{multi_task_forward.1} parent=1 // pred_check
      _
    $region51: #{multi_task_forward.1} parent=1 // pred_check_branch
      %127 = sbr.rel (0) target = $region53
    $region52: #{multi_task_forward.1} parent=1 // pred_region
      %128 = dma.done [#allocation5], 16
    $region53: #{multi_task_forward.1} parent=1 // pred_fallthru
      _
    // Predicated region
    $region54: #{multi_task_forward.1} parent=1 // pred_check
      _
    $region55: #{multi_task_forward.1} parent=1 // pred_check_branch
      %130 = sbr.rel (0) target = $region57
    $region56: #{multi_task_forward.1} parent=1 // pred_region
      %131 = dma.done [#allocation5], 16
    $region57: #{multi_task_forward.1} parent=1 // pred_fallthru
      _
    // Predicated region
    $region58: #{multi_task_forward.1} parent=1 // pred_check
      _
    $region59: #{multi_task_forward.1} parent=1 // pred_check_branch
      %133 = sbr.rel (0) target = $region61
    $region60: #{multi_task_forward.1} parent=1 // pred_region
      %134 = dma.done [#allocation8], 16
    $region61: #{multi_task_forward.1} parent=1 // pred_fallthru
      _
    // Predicated region
    $region62: #{multi_task_forward.1} parent=1 // pred_check
      _
    $region63: #{multi_task_forward.1} parent=1 // pred_check_branch
      %136 = sbr.rel (0) target = $region65
    $region64: #{multi_task_forward.1} parent=1 // pred_region
      %137 = dma.done [#allocation8], 2048
    $region65: #{multi_task_forward.1} parent=1 // pred_fallthru
      _
    // Predicated region
    $region66: #{multi_task_forward.1} parent=1 // pred_check
      _
    $region67: #{multi_task_forward.1} parent=1 // pred_check_branch
      %139 = sbr.rel (0) target = $region69
    $region68: #{multi_task_forward.1} parent=1 // pred_region
      %140 = dma.done [#allocation11], 16384
    $region69: #{multi_task_forward.1} parent=1 // pred_fallthru
      _
    // Predicated region
    $region70: #{multi_task_forward.1} parent=1 // pred_check
      _
    $region71: #{multi_task_forward.1} parent=1 // pred_check_branch
      %142 = sbr.rel (0) target = $region73
    $region72: #{multi_task_forward.1} parent=1 // pred_region
      %143 = dma.done [#allocation11], 32
    $region73: #{multi_task_forward.1} parent=1 // pred_fallthru
      _
    // Predicated region
    $region74: #{multi_task_forward.1} parent=1 // pred_check
      _
    $region75: #{multi_task_forward.1} parent=1 // pred_check_branch
      %145 = sbr.rel (0) target = $region77
    $region76: #{multi_task_forward.1} parent=1 // pred_region
      %146 = dma.done [#allocation14], 4096
    $region77: #{multi_task_forward.1} parent=1 // pred_fallthru
      _
    // Predicated region
    $region78: #{multi_task_forward.1} parent=1 // pred_check
      _
    $region79: #{multi_task_forward.1} parent=1 // pred_check_branch
      %148 = sbr.rel (0) target = $region81
    $region80: #{multi_task_forward.1} parent=1 // pred_region
      %149 = dma.done [#allocation14], 16
    $region81: #{multi_task_forward.1} parent=1 // pred_fallthru
      _
    %v150 = vld [vmem:[%s0] sm:$0xff]
    %v151 = vld [vmem:[%s0 + $0x8] sm:$0xff]
    %vm152 = vcmask 261120
    %v153 = vsel %vm152, %v150, 0.0
    %v154 = vrot.slane %v153, 4
    %v155 = vadd.f32 %v153, %v154
    %v156 = vrot.slane %v155, 2
    %v157 = vadd.f32 %v155, %v156
    %v158 = vrot.slane %v157, 1
    %v159 = vadd.f32 %v157, %v158
    %v160 = vsel %vm152, %v151, 0.0
    %v161 = vrot.slane %v160, 4
    %v162 = vadd.f32 %v160, %v161
    %v163 = vrot.slane %v162, 2
    %v164 = vadd.f32 %v162, %v163
    %v165 = vrot.slane %v164, 1
    %v166 = vadd.f32 %v164, %v165
    %v167 = vrcp.pop 8.0
    %v168 = vmul.f32 %v159, %v167
    %v169 = vmul.f32 %v166, %v167
    %v170 = vadd.f32 %v150, %v168
    %v171 = vadd.f32 %v151, %v169
    %v172 = vmul.f32 %v170, 0.5
    %v173 = vmul.f32 %v171, 0.5
    %v174 = vld [vmem:[#allocation2] sm:$0xff]
    %v175 = vld [vmem:[#allocation2 + $0x8] sm:$0xff]
    %v176 = vld [vmem:[#allocation2 + $0x10] sm:$0xff]
    %v177 = vld [vmem:[#allocation2 + $0x18] sm:$0xff]
    %v178 = vld [vmem:[#allocation4] sm:$0x1]
    %v180 = vlaneseq
    %v181 = vshrl.u32 %v180, 7
    %v182 = vsub.s32 0, %v181
    %v183 = vrot.slane %v178, %v182
    %v187 = vrot.slane %v172, 7
    %v188 = vrot.slane %v173, 6
    %vm189 = vcmask 1041409
    %v190 = vsel %vm189, %v188, %v187
    %v191 = vsel %vm152, %v190, 0
    %193 = vmatprep.subr.mxu0 0.0
    %194 = vmatpush1.msra.mxu0 0.0
    %195 = vmatprep.subr.mxu0 0.0
    %196 = vmatpush1.msra.mxu0 0.0
    %197 = vmatprep.subr.mxu0 0.0
    %198 = vmatpush1.msra.mxu0 0.0
    %199 = vmatprep.subr.mxu0 0.0
    %200 = vmatpush1.msra.mxu0 0.0
    %201 = vmatprep.subr.mxu0 0.0
    %202 = vmatpush1.msra.mxu0 0.0
    %203 = vmatprep.subr.mxu0 0.0
    %204 = vmatpush1.msra.mxu0 0.0
    %205 = vmatprep.subr.mxu0 0.0
    %206 = vmatpush1.msra.mxu0 0.0
    %207 = vmatprep.subr.mxu0 0.0
    %208 = vmatpush1.msra.mxu0 0.0
    %209 = vmatprep.subr.mxu0 0.0
    %210 = vmatpush1.msra.mxu0 0.0
    %211 = vmatprep.subr.mxu0 0.0
    %212 = vmatpush1.msra.mxu0 0.0
    %213 = vmatprep.subr.mxu0 0.0
    %214 = vmatpush1.msra.mxu0 0.0
    %215 = vmatprep.subr.mxu0 0.0
    %216 = vmatpush1.msra.mxu0 0.0
    %217 = vmatprep.subr.mxu0 0.0
    %218 = vmatpush1.msra.mxu0 %v177
    %219 = vmatprep.subr.mxu0 0.0
    %220 = vmatpush1.msra.mxu0 %v176
    %221 = vmatprep.subr.mxu0 0.0
    %222 = vmatpush1.msra.mxu0 %v175
    %223 = vmatprep.subr.mxu0 0.0
    %224 = vmatpush1.msra.mxu0 %v174
    %225 = vmatprep.subr.mxu0 0.0
    %226 = vmatpush2.msra.mxu0 0.0
    %227 = vmatprep.subr.mxu0 0.0
    %228 = vmatpush2.msra.mxu0 0.0
    %229 = vmatprep.subr.mxu0 0.0
    %230 = vmatpush2.msra.mxu0 0.0
    %231 = vmatprep.subr.mxu0 0.0
    %232 = vmatpush2.msra.mxu0 0.0
    %233 = vmatprep.subr.mxu0 0.0
    %234 = vmatpush2.msra.mxu0 0.0
    %235 = vmatprep.subr.mxu0 0.0
    %236 = vmatpush2.msra.mxu0 0.0
    %237 = vmatprep.subr.mxu0 0.0
    %238 = vmatpush2.msra.mxu0 0.0
    %239 = vmatprep.subr.mxu0 0.0
    %240 = vmatpush2.msra.mxu0 0.0
    %241 = vmatprep.subr.mxu0 0.0
    %242 = vmatpush2.msra.mxu0 0.0
    %243 = vmatprep.subr.mxu0 0.0
    %244 = vmatpush2.msra.mxu0 0.0
    %245 = vmatprep.subr.mxu0 0.0
    %246 = vmatpush2.msra.mxu0 0.0
    %247 = vmatprep.subr.mxu0 0.0
    %248 = vmatpush2.msra.mxu0 0.0
    %249 = vmatprep.subr.mxu0 0.0
    %250 = vmatpush2.msra.mxu0 0.0
    %251 = vmatprep.subr.mxu0 0.0
    %252 = vmatpush2.msra.mxu0 0.0
    %253 = vmatprep.subr.mxu0 0.0
    %254 = vmatpush2.msra.mxu0 0.0
    %255 = vmatprep.subr.mxu0 0.0
    %256 = vmatpush2.msra.mxu0 0.0
    %257 = vmatprep.mubr.f32.mxu0 0.0
    %258 = vmatmul.mubr.f32.gmra.mxu0 %v191
    %v259 = vpop.f32.mrf.mxu0
    %v260 = vadd.f32 %v183, %v259
    %v261 = vpop.f32.mrf.mxu0
    %262 = vdwg.mxu0
    %vm263 = vcmask 254976
    %v264 = vsel %vm263, %v260, 0.0
    %265 = vadd.xlane.f32.xlu0 %v264
    %v266 = vpop.xlane.xlu0 %265
    %v267 = vrcp.pop 32.0
    %v268 = vmul.f32 %v266, %v267
    %v269 = vsub.f32 %v260, %v268
    %v270 = vmul.f32 %v269, %v269
    %v271 = vsel %vm263, %v270, 0.0
    %272 = vadd.xlane.f32.xlu0 %v271
    %v273 = vpop.xlane.xlu0 %272
    %v274 = vmul.f32 %v273, %v267
    %v275 = vadd.f32 %v274, 1e-05
    %v276 = vrsqrt.pop %v275
    %v277 = vmul.f32 %v269, %v276
    %v278 = vld [vmem:[#allocation6] sm:$0x1]
    %v280 = vlaneseq
    %v281 = vshrl.u32 %v280, 7
    %v282 = vsub.s32 0, %v281
    %v283 = vrot.slane %v278, %v282
    %v285 = vmul.f32 %v277, %v283
    %v286 = vld [vmem:[#allocation7] sm:$0x1]
    %v288 = vlaneseq
    %v289 = vshrl.u32 %v288, 7
    %v290 = vsub.s32 0, %v289
    %v291 = vrot.slane %v286, %v290
    %v293 = vadd.f32 %v285, %v291
    %v294 = vmax.f32 %v293, 0.0
    %v295 = vld [vmem:[#allocation9] sm:$0xff]
    %v296 = vld [vmem:[#allocation9 + $0x8] sm:$0xff]
    %v297 = vld [vmem:[#allocation9 + $0x10] sm:$0xff]
    %v298 = vld [vmem:[#allocation9 + $0x18] sm:$0xff]
    %v299 = vld [vmem:[#allocation9 + $0x20] sm:$0xff]
    %v300 = vld [vmem:[#allocation9 + $0x28] sm:$0xff]
    %v301 = vld [vmem:[#allocation9 + $0x30] sm:$0xff]
    %v302 = vld [vmem:[#allocation9 + $0x38] sm:$0xff]
    %v303 = vld [vmem:[#allocation9 + $0x40] sm:$0xff]
    %v304 = vld [vmem:[#allocation9 + $0x48] sm:$0xff]
    %v305 = vld [vmem:[#allocation9 + $0x50] sm:$0xff]
    %v306 = vld [vmem:[#allocation9 + $0x58] sm:$0xff]
    %v307 = vld [vmem:[#allocation9 + $0x60] sm:$0xff]
    %v308 = vld [vmem:[#allocation9 + $0x68] sm:$0xff]
    %v309 = vld [vmem:[#allocation9 + $0x70] sm:$0xff]
    %v310 = vld [vmem:[#allocation9 + $0x78] sm:$0xff]
    %v311 = vld [vmem:[%s6] sm:$0xf]
    %v313 = vlaneseq
    %v314 = vshrl.u32 %v313, 7
    %v315 = vsub.s32 0, %v314
    %v316 = vrot.slane %v311, %v315
    %v317 = vlaneseq
    %v318 = vshrl.u32 %v317, 7
    %v319 = vsub.s32 1, %v318
    %v320 = vrot.slane %v311, %v319
    %v321 = vlaneseq
    %v322 = vshrl.u32 %v321, 7
    %v323 = vsub.s32 2, %v322
    %v324 = vrot.slane %v311, %v323
    %v325 = vlaneseq
    %v326 = vshrl.u32 %v325, 7
    %v327 = vsub.s32 3, %v326
    %v328 = vrot.slane %v311, %v327
    %v334 = vsel %vm152, %v294, 0
    %336 = vmatprep.subr.mxu0 0.0
    %337 = vmatpush1.msra.mxu0 0.0
    %338 = vmatprep.subr.mxu0 0.0
    %339 = vmatpush1.msra.mxu0 0.0
    %340 = vmatprep.subr.mxu0 0.0
    %341 = vmatpush1.msra.mxu0 0.0
    %342 = vmatprep.subr.mxu0 0.0
    %343 = vmatpush1.msra.mxu0 0.0
    %344 = vmatprep.subr.mxu0 0.0
    %345 = vmatpush1.msra.mxu0 0.0
    %346 = vmatprep.subr.mxu0 0.0
    %347 = vmatpush1.msra.mxu0 0.0
    %348 = vmatprep.subr.mxu0 0.0
    %349 = vmatpush1.msra.mxu0 0.0
    %350 = vmatprep.subr.mxu0 0.0
    %351 = vmatpush1.msra.mxu0 0.0
    %352 = vmatprep.subr.mxu0 0.0
    %353 = vmatpush1.msra.mxu0 0.0
    %354 = vmatprep.subr.mxu0 0.0
    %355 = vmatpush1.msra.mxu0 0.0
    %356 = vmatprep.subr.mxu0 0.0
    %357 = vmatpush1.msra.mxu0 0.0
    %358 = vmatprep.subr.mxu0 0.0
    %359 = vmatpush1.msra.mxu0 0.0
    %360 = vmatprep.subr.mxu0 %v308
    %361 = vmatpush1.msra.mxu0 %v307
    %362 = vmatprep.subr.mxu0 %v304
    %363 = vmatpush1.msra.mxu0 %v303
    %364 = vmatprep.subr.mxu0 %v300
    %365 = vmatpush1.msra.mxu0 %v299
    %366 = vmatprep.subr.mxu0 %v296
    %367 = vmatpush1.msra.mxu0 %v295
    %368 = vmatprep.subr.mxu0 0.0
    %369 = vmatpush2.msra.mxu0 0.0
    %370 = vmatprep.subr.mxu0 0.0
    %371 = vmatpush2.msra.mxu0 0.0
    %372 = vmatprep.subr.mxu0 0.0
    %373 = vmatpush2.msra.mxu0 0.0
    %374 = vmatprep.subr.mxu0 0.0
    %375 = vmatpush2.msra.mxu0 0.0
    %376 = vmatprep.subr.mxu0 0.0
    %377 = vmatpush2.msra.mxu0 0.0
    %378 = vmatprep.subr.mxu0 0.0
    %379 = vmatpush2.msra.mxu0 0.0
    %380 = vmatprep.subr.mxu0 0.0
    %381 = vmatpush2.msra.mxu0 0.0
    %382 = vmatprep.subr.mxu0 0.0
    %383 = vmatpush2.msra.mxu0 0.0
    %384 = vmatprep.subr.mxu0 0.0
    %385 = vmatpush2.msra.mxu0 0.0
    %386 = vmatprep.subr.mxu0 0.0
    %387 = vmatpush2.msra.mxu0 0.0
    %388 = vmatprep.subr.mxu0 0.0
    %389 = vmatpush2.msra.mxu0 0.0
    %390 = vmatprep.subr.mxu0 0.0
    %391 = vmatpush2.msra.mxu0 0.0
    %392 = vmatprep.subr.mxu0 0.0
    %393 = vmatpush2.msra.mxu0 0.0
    %394 = vmatprep.subr.mxu0 0.0
    %395 = vmatpush2.msra.mxu0 0.0
    %396 = vmatprep.subr.mxu0 0.0
    %397 = vmatpush2.msra.mxu0 0.0
    %398 = vmatprep.subr.mxu0 0.0
    %399 = vmatpush2.msra.mxu0 0.0
    %400 = vmatprep.mubr.f32.mxu0 0.0
    %401 = vmatmul.mubr.f32.gmra.mxu0 %v334
    %v402 = vpop.f32.mrf.mxu0
    %v403 = vadd.f32 %v316, %v402
    %v404 = vpop.f32.mrf.mxu0
    %v405 = vadd.f32 %v320, %v404
    %406 = vdwg.mxu0
    %407 = vmatprep.subr.mxu0 0.0
    %408 = vmatpush1.msra.mxu0 0.0
    %409 = vmatprep.subr.mxu0 0.0
    %410 = vmatpush1.msra.mxu0 0.0
    %411 = vmatprep.subr.mxu0 0.0
    %412 = vmatpush1.msra.mxu0 0.0
    %413 = vmatprep.subr.mxu0 0.0
    %414 = vmatpush1.msra.mxu0 0.0
    %415 = vmatprep.subr.mxu0 0.0
    %416 = vmatpush1.msra.mxu0 0.0
    %417 = vmatprep.subr.mxu0 0.0
    %418 = vmatpush1.msra.mxu0 0.0
    %419 = vmatprep.subr.mxu0 0.0
    %420 = vmatpush1.msra.mxu0 0.0
    %421 = vmatprep.subr.mxu0 0.0
    %422 = vmatpush1.msra.mxu0 0.0
    %423 = vmatprep.subr.mxu0 0.0
    %424 = vmatpush1.msra.mxu0 0.0
    %425 = vmatprep.subr.mxu0 0.0
    %426 = vmatpush1.msra.mxu0 0.0
    %427 = vmatprep.subr.mxu0 0.0
    %428 = vmatpush1.msra.mxu0 0.0
    %429 = vmatprep.subr.mxu0 0.0
    %430 = vmatpush1.msra.mxu0 0.0
    %431 = vmatprep.subr.mxu0 %v310
    %432 = vmatpush1.msra.mxu0 %v309
    %433 = vmatprep.subr.mxu0 %v306
    %434 = vmatpush1.msra.mxu0 %v305
    %435 = vmatprep.subr.mxu0 %v302
    %436 = vmatpush1.msra.mxu0 %v301
    %437 = vmatprep.subr.mxu0 %v298
    %438 = vmatpush1.msra.mxu0 %v297
    %439 = vmatprep.subr.mxu0 0.0
    %440 = vmatpush2.msra.mxu0 0.0
    %441 = vmatprep.subr.mxu0 0.0
    %442 = vmatpush2.msra.mxu0 0.0
    %443 = vmatprep.subr.mxu0 0.0
    %444 = vmatpush2.msra.mxu0 0.0
    %445 = vmatprep.subr.mxu0 0.0
    %446 = vmatpush2.msra.mxu0 0.0
    %447 = vmatprep.subr.mxu0 0.0
    %448 = vmatpush2.msra.mxu0 0.0
    %449 = vmatprep.subr.mxu0 0.0
    %450 = vmatpush2.msra.mxu0 0.0
    %451 = vmatprep.subr.mxu0 0.0
    %452 = vmatpush2.msra.mxu0 0.0
    %453 = vmatprep.subr.mxu0 0.0
    %454 = vmatpush2.msra.mxu0 0.0
    %455 = vmatprep.subr.mxu0 0.0
    %456 = vmatpush2.msra.mxu0 0.0
    %457 = vmatprep.subr.mxu0 0.0
    %458 = vmatpush2.msra.mxu0 0.0
    %459 = vmatprep.subr.mxu0 0.0
    %460 = vmatpush2.msra.mxu0 0.0
    %461 = vmatprep.subr.mxu0 0.0
    %462 = vmatpush2.msra.mxu0 0.0
    %463 = vmatprep.subr.mxu0 0.0
    %464 = vmatpush2.msra.mxu0 0.0
    %465 = vmatprep.subr.mxu0 0.0
    %466 = vmatpush2.msra.mxu0 0.0
    %467 = vmatprep.subr.mxu0 0.0
    %468 = vmatpush2.msra.mxu0 0.0
    %469 = vmatprep.subr.mxu0 0.0
    %470 = vmatpush2.msra.mxu0 0.0
    %471 = vmatprep.mubr.f32.mxu0 0.0
    %472 = vmatmul.mubr.f32.gmra.mxu0 %v334
    %v473 = vpop.f32.mrf.mxu0
    %v474 = vadd.f32 %v324, %v473
    %v475 = vpop.f32.mrf.mxu0
    %v476 = vadd.f32 %v328, %v475
    %477 = vdwg.mxu0
    %v478 = vmax.f32 %v403, 0.0
    %v479 = vmax.f32 %v405, 0.0
    %v480 = vmax.f32 %v474, 0.0
    %v481 = vmax.f32 %v476, 0.0
    %v482 = vld [vmem:[#allocation10] sm:$0xff]
    %v483 = vld [vmem:[#allocation10 + $0x8] sm:$0xff]
    %v484 = vld [vmem:[#allocation10 + $0x10] sm:$0xff]
    %v485 = vld [vmem:[#allocation10 + $0x18] sm:$0xff]
    %v486 = vld [vmem:[#allocation10 + $0x20] sm:$0xff]
    %v487 = vld [vmem:[#allocation10 + $0x28] sm:$0xff]
    %v488 = vld [vmem:[#allocation10 + $0x30] sm:$0xff]
    %v489 = vld [vmem:[#allocation10 + $0x38] sm:$0xff]
    %v490 = vld [vmem:[#allocation10 + $0x40] sm:$0xff]
    %v491 = vld [vmem:[#allocation10 + $0x48] sm:$0xff]
    %v492 = vld [vmem:[#allocation10 + $0x50] sm:$0xff]
    %v493 = vld [vmem:[#allocation10 + $0x58] sm:$0xff]
    %v494 = vld [vmem:[#allocation10 + $0x60] sm:$0xff]
    %v495 = vld [vmem:[#allocation10 + $0x68] sm:$0xff]
    %v496 = vld [vmem:[#allocation10 + $0x70] sm:$0xff]
    %v497 = vld [vmem:[#allocation10 + $0x78] sm:$0xff]
    %v498 = vld [vmem:[#allocation10 + $0x80] sm:$0xff]
    %v499 = vld [vmem:[#allocation10 + $0x88] sm:$0xff]
    %v500 = vld [vmem:[#allocation10 + $0x90] sm:$0xff]
    %v501 = vld [vmem:[#allocation10 + $0x98] sm:$0xff]
    %v502 = vld [vmem:[#allocation10 + $0xa0] sm:$0xff]
    %v503 = vld [vmem:[#allocation10 + $0xa8] sm:$0xff]
    %v504 = vld [vmem:[#allocation10 + $0xb0] sm:$0xff]
    %v505 = vld [vmem:[#allocation10 + $0xb8] sm:$0xff]
    %v506 = vld [vmem:[#allocation10 + $0xc0] sm:$0xff]
    %v507 = vld [vmem:[#allocation10 + $0xc8] sm:$0xff]
    %v508 = vld [vmem:[#allocation10 + $0xd0] sm:$0xff]
    %v509 = vld [vmem:[#allocation10 + $0xd8] sm:$0xff]
    %v510 = vld [vmem:[#allocation10 + $0xe0] sm:$0xff]
    %v511 = vld [vmem:[#allocation10 + $0xe8] sm:$0xff]
    %v512 = vld [vmem:[#allocation10 + $0xf0] sm:$0xff]
    %v513 = vld [vmem:[#allocation10 + $0xf8] sm:$0xff]
    %v514 = vld [vmem:[#allocation10 + $0x100] sm:$0xff]
    %v515 = vld [vmem:[#allocation10 + $0x108] sm:$0xff]
    %v516 = vld [vmem:[#allocation10 + $0x110] sm:$0xff]
    %v517 = vld [vmem:[#allocation10 + $0x118] sm:$0xff]
    %v518 = vld [vmem:[#allocation10 + $0x120] sm:$0xff]
    %v519 = vld [vmem:[#allocation10 + $0x128] sm:$0xff]
    %v520 = vld [vmem:[#allocation10 + $0x130] sm:$0xff]
    %v521 = vld [vmem:[#allocation10 + $0x138] sm:$0xff]
    %v522 = vld [vmem:[#allocation10 + $0x140] sm:$0xff]
    %v523 = vld [vmem:[#allocation10 + $0x148] sm:$0xff]
    %v524 = vld [vmem:[#allocation10 + $0x150] sm:$0xff]
    %v525 = vld [vmem:[#allocation10 + $0x158] sm:$0xff]
    %v526 = vld [vmem:[#allocation10 + $0x160] sm:$0xff]
    %v527 = vld [vmem:[#allocation10 + $0x168] sm:$0xff]
    %v528 = vld [vmem:[#allocation10 + $0x170] sm:$0xff]
    %v529 = vld [vmem:[#allocation10 + $0x178] sm:$0xff]
    %v530 = vld [vmem:[#allocation10 + $0x180] sm:$0xff]
    %v531 = vld [vmem:[#allocation10 + $0x188] sm:$0xff]
    %v532 = vld [vmem:[#allocation10 + $0x190] sm:$0xff]
    %v533 = vld [vmem:[#allocation10 + $0x198] sm:$0xff]
    %v534 = vld [vmem:[#allocation10 + $0x1a0] sm:$0xff]
    %v535 = vld [vmem:[#allocation10 + $0x1a8] sm:$0xff]
    %v536 = vld [vmem:[#allocation10 + $0x1b0] sm:$0xff]
    %v537 = vld [vmem:[#allocation10 + $0x1b8] sm:$0xff]
    %v538 = vld [vmem:[#allocation10 + $0x1c0] sm:$0xff]
    %v539 = vld [vmem:[#allocation10 + $0x1c8] sm:$0xff]
    %v540 = vld [vmem:[#allocation10 + $0x1d0] sm:$0xff]
    %v541 = vld [vmem:[#allocation10 + $0x1d8] sm:$0xff]
    %v542 = vld [vmem:[#allocation10 + $0x1e0] sm:$0xff]
    %v543 = vld [vmem:[#allocation10 + $0x1e8] sm:$0xff]
    %v544 = vld [vmem:[#allocation10 + $0x1f0] sm:$0xff]
    %v545 = vld [vmem:[#allocation10 + $0x1f8] sm:$0xff]
    %v546 = vld [vmem:[#allocation10 + $0x200] sm:$0xff]
    %v547 = vld [vmem:[#allocation10 + $0x208] sm:$0xff]
    %v548 = vld [vmem:[#allocation10 + $0x210] sm:$0xff]
    %v549 = vld [vmem:[#allocation10 + $0x218] sm:$0xff]
    %v550 = vld [vmem:[#allocation10 + $0x220] sm:$0xff]
    %v551 = vld [vmem:[#allocation10 + $0x228] sm:$0xff]
    %v552 = vld [vmem:[#allocation10 + $0x230] sm:$0xff]
    %v553 = vld [vmem:[#allocation10 + $0x238] sm:$0xff]
    %v554 = vld [vmem:[#allocation10 + $0x240] sm:$0xff]
    %v555 = vld [vmem:[#allocation10 + $0x248] sm:$0xff]
    %v556 = vld [vmem:[#allocation10 + $0x250] sm:$0xff]
    %v557 = vld [vmem:[#allocation10 + $0x258] sm:$0xff]
    %v558 = vld [vmem:[#allocation10 + $0x260] sm:$0xff]
    %v559 = vld [vmem:[#allocation10 + $0x268] sm:$0xff]
    %v560 = vld [vmem:[#allocation10 + $0x270] sm:$0xff]
    %v561 = vld [vmem:[#allocation10 + $0x278] sm:$0xff]
    %v562 = vld [vmem:[#allocation10 + $0x280] sm:$0xff]
    %v563 = vld [vmem:[#allocation10 + $0x288] sm:$0xff]
    %v564 = vld [vmem:[#allocation10 + $0x290] sm:$0xff]
    %v565 = vld [vmem:[#allocation10 + $0x298] sm:$0xff]
    %v566 = vld [vmem:[#allocation10 + $0x2a0] sm:$0xff]
    %v567 = vld [vmem:[#allocation10 + $0x2a8] sm:$0xff]
    %v568 = vld [vmem:[#allocation10 + $0x2b0] sm:$0xff]
    %v569 = vld [vmem:[#allocation10 + $0x2b8] sm:$0xff]
    %v570 = vld [vmem:[#allocation10 + $0x2c0] sm:$0xff]
    %v571 = vld [vmem:[#allocation10 + $0x2c8] sm:$0xff]
    %v572 = vld [vmem:[#allocation10 + $0x2d0] sm:$0xff]
    %v573 = vld [vmem:[#allocation10 + $0x2d8] sm:$0xff]
    %v574 = vld [vmem:[#allocation10 + $0x2e0] sm:$0xff]
    %v575 = vld [vmem:[#allocation10 + $0x2e8] sm:$0xff]
    %v576 = vld [vmem:[#allocation10 + $0x2f0] sm:$0xff]
    %v577 = vld [vmem:[#allocation10 + $0x2f8] sm:$0xff]
    %v578 = vld [vmem:[#allocation10 + $0x300] sm:$0xff]
    %v579 = vld [vmem:[#allocation10 + $0x308] sm:$0xff]
    %v580 = vld [vmem:[#allocation10 + $0x310] sm:$0xff]
    %v581 = vld [vmem:[#allocation10 + $0x318] sm:$0xff]
    %v582 = vld [vmem:[#allocation10 + $0x320] sm:$0xff]
    %v583 = vld [vmem:[#allocation10 + $0x328] sm:$0xff]
    %v584 = vld [vmem:[#allocation10 + $0x330] sm:$0xff]
    %v585 = vld [vmem:[#allocation10 + $0x338] sm:$0xff]
    %v586 = vld [vmem:[#allocation10 + $0x340] sm:$0xff]
    %v587 = vld [vmem:[#allocation10 + $0x348] sm:$0xff]
    %v588 = vld [vmem:[#allocation10 + $0x350] sm:$0xff]
    %v589 = vld [vmem:[#allocation10 + $0x358] sm:$0xff]
    %v590 = vld [vmem:[#allocation10 + $0x360] sm:$0xff]
    %v591 = vld [vmem:[#allocation10 + $0x368] sm:$0xff]
    %v592 = vld [vmem:[#allocation10 + $0x370] sm:$0xff]
    %v593 = vld [vmem:[#allocation10 + $0x378] sm:$0xff]
    %v594 = vld [vmem:[#allocation10 + $0x380] sm:$0xff]
    %v595 = vld [vmem:[#allocation10 + $0x388] sm:$0xff]
    %v596 = vld [vmem:[#allocation10 + $0x390] sm:$0xff]
    %v597 = vld [vmem:[#allocation10 + $0x398] sm:$0xff]
    %v598 = vld [vmem:[#allocation10 + $0x3a0] sm:$0xff]
    %v599 = vld [vmem:[#allocation10 + $0x3a8] sm:$0xff]
    %v600 = vld [vmem:[#allocation10 + $0x3b0] sm:$0xff]
    %v601 = vld [vmem:[#allocation10 + $0x3b8] sm:$0xff]
    %v602 = vld [vmem:[#allocation10 + $0x3c0] sm:$0xff]
    %v603 = vld [vmem:[#allocation10 + $0x3c8] sm:$0xff]
    %v604 = vld [vmem:[#allocation10 + $0x3d0] sm:$0xff]
    %v605 = vld [vmem:[#allocation10 + $0x3d8] sm:$0xff]
    %v606 = vld [vmem:[#allocation10 + $0x3e0] sm:$0xff]
    %v607 = vld [vmem:[#allocation10 + $0x3e8] sm:$0xff]
    %v608 = vld [vmem:[#allocation10 + $0x3f0] sm:$0xff]
    %v609 = vld [vmem:[#allocation10 + $0x3f8] sm:$0xff]
    %v610 = vld [vmem:[#allocation12] sm:$0x3]
    %v612 = vlaneseq
    %v613 = vshrl.u32 %v612, 7
    %v614 = vsub.s32 0, %v613
    %v615 = vrot.slane %v610, %v614
    %v616 = vlaneseq
    %v617 = vshrl.u32 %v616, 7
    %v618 = vsub.s32 1, %v617
    %v619 = vrot.slane %v610, %v618
    %622 = vmatprep.subr.mxu0 %v513
    %623 = vmatpush1.msra.mxu0 %v512
    %624 = vmatprep.subr.mxu0 %v511
    %625 = vmatpush1.msra.mxu0 %v510
    %626 = vmatprep.subr.mxu0 %v509
    %627 = vmatpush1.msra.mxu0 %v508
    %628 = vmatprep.subr.mxu0 %v507
    %629 = vmatpush1.msra.mxu0 %v506
    %630 = vmatprep.subr.mxu0 %v505
    %631 = vmatpush1.msra.mxu0 %v504
    %632 = vmatprep.subr.mxu0 %v503
    %633 = vmatpush1.msra.mxu0 %v502
    %634 = vmatprep.subr.mxu0 %v501
    %635 = vmatpush1.msra.mxu0 %v500
    %636 = vmatprep.subr.mxu0 %v499
    %637 = vmatpush1.msra.mxu0 %v498
    %638 = vmatprep.subr.mxu0 %v497
    %639 = vmatpush1.msra.mxu0 %v496
    %640 = vmatprep.subr.mxu0 %v495
    %641 = vmatpush1.msra.mxu0 %v494
    %642 = vmatprep.subr.mxu0 %v493
    %643 = vmatpush1.msra.mxu0 %v492
    %644 = vmatprep.subr.mxu0 %v491
    %645 = vmatpush1.msra.mxu0 %v490
    %646 = vmatprep.subr.mxu0 %v489
    %647 = vmatpush1.msra.mxu0 %v488
    %648 = vmatprep.subr.mxu0 %v487
    %649 = vmatpush1.msra.mxu0 %v486
    %650 = vmatprep.subr.mxu0 %v485
    %651 = vmatpush1.msra.mxu0 %v484
    %652 = vmatprep.subr.mxu0 %v483
    %653 = vmatpush1.msra.mxu0 %v482
    %654 = vmatprep.subr.mxu0 %v545
    %655 = vmatpush2.msra.mxu0 %v544
    %656 = vmatprep.subr.mxu0 %v543
    %657 = vmatpush2.msra.mxu0 %v542
    %658 = vmatprep.subr.mxu0 %v541
    %659 = vmatpush2.msra.mxu0 %v540
    %660 = vmatprep.subr.mxu0 %v539
    %661 = vmatpush2.msra.mxu0 %v538
    %662 = vmatprep.subr.mxu0 %v537
    %663 = vmatpush2.msra.mxu0 %v536
    %664 = vmatprep.subr.mxu0 %v535
    %665 = vmatpush2.msra.mxu0 %v534
    %666 = vmatprep.subr.mxu0 %v533
    %667 = vmatpush2.msra.mxu0 %v532
    %668 = vmatprep.subr.mxu0 %v531
    %669 = vmatpush2.msra.mxu0 %v530
    %670 = vmatprep.subr.mxu0 %v529
    %671 = vmatpush2.msra.mxu0 %v528
    %672 = vmatprep.subr.mxu0 %v527
    %673 = vmatpush2.msra.mxu0 %v526
    %674 = vmatprep.subr.mxu0 %v525
    %675 = vmatpush2.msra.mxu0 %v524
    %676 = vmatprep.subr.mxu0 %v523
    %677 = vmatpush2.msra.mxu0 %v522
    %678 = vmatprep.subr.mxu0 %v521
    %679 = vmatpush2.msra.mxu0 %v520
    %680 = vmatprep.subr.mxu0 %v519
    %681 = vmatpush2.msra.mxu0 %v518
    %682 = vmatprep.subr.mxu0 %v517
    %683 = vmatpush2.msra.mxu0 %v516
    %684 = vmatprep.subr.mxu0 %v515
    %685 = vmatpush2.msra.mxu0 %v514
    %686 = vmatprep.mubr.f32.mxu0 %v479
    %687 = vmatmul.mubr.f32.gmra.mxu0 %v478
    %v688 = vpop.f32.mrf.mxu0
    %v689 = vadd.f32 %v615, %v688
    %v690 = vpop.f32.mrf.mxu0
    %v691 = vadd.f32 %v619, %v690
    %692 = vdwg.mxu0
    %693 = vmatprep.subr.mxu0 %v577
    %694 = vmatpush1.msra.mxu0 %v576
    %695 = vmatprep.subr.mxu0 %v575
    %696 = vmatpush1.msra.mxu0 %v574
    %697 = vmatprep.subr.mxu0 %v573
    %698 = vmatpush1.msra.mxu0 %v572
    %699 = vmatprep.subr.mxu0 %v571
    %700 = vmatpush1.msra.mxu0 %v570
    %701 = vmatprep.subr.mxu0 %v569
    %702 = vmatpush1.msra.mxu0 %v568
    %703 = vmatprep.subr.mxu0 %v567
    %704 = vmatpush1.msra.mxu0 %v566
    %705 = vmatprep.subr.mxu0 %v565
    %706 = vmatpush1.msra.mxu0 %v564
    %707 = vmatprep.subr.mxu0 %v563
    %708 = vmatpush1.msra.mxu0 %v562
    %709 = vmatprep.subr.mxu0 %v561
    %710 = vmatpush1.msra.mxu0 %v560
    %711 = vmatprep.subr.mxu0 %v559
    %712 = vmatpush1.msra.mxu0 %v558
    %713 = vmatprep.subr.mxu0 %v557
    %714 = vmatpush1.msra.mxu0 %v556
    %715 = vmatprep.subr.mxu0 %v555
    %716 = vmatpush1.msra.mxu0 %v554
    %717 = vmatprep.subr.mxu0 %v553
    %718 = vmatpush1.msra.mxu0 %v552
    %719 = vmatprep.subr.mxu0 %v551
    %720 = vmatpush1.msra.mxu0 %v550
    %721 = vmatprep.subr.mxu0 %v549
    %722 = vmatpush1.msra.mxu0 %v548
    %723 = vmatprep.subr.mxu0 %v547
    %724 = vmatpush1.msra.mxu0 %v546
    %725 = vmatprep.subr.mxu0 %v609
    %726 = vmatpush2.msra.mxu0 %v608
    %727 = vmatprep.subr.mxu0 %v607
    %728 = vmatpush2.msra.mxu0 %v606
    %729 = vmatprep.subr.mxu0 %v605
    %730 = vmatpush2.msra.mxu0 %v604
    %731 = vmatprep.subr.mxu0 %v603
    %732 = vmatpush2.msra.mxu0 %v602
    %733 = vmatprep.subr.mxu0 %v601
    %734 = vmatpush2.msra.mxu0 %v600
    %735 = vmatprep.subr.mxu0 %v599
    %736 = vmatpush2.msra.mxu0 %v598
    %737 = vmatprep.subr.mxu0 %v597
    %738 = vmatpush2.msra.mxu0 %v596
    %739 = vmatprep.subr.mxu0 %v595
    %740 = vmatpush2.msra.mxu0 %v594
    %741 = vmatprep.subr.mxu0 %v593
    %742 = vmatpush2.msra.mxu0 %v592
    %743 = vmatprep.subr.mxu0 %v591
    %744 = vmatpush2.msra.mxu0 %v590
    %745 = vmatprep.subr.mxu0 %v589
    %746 = vmatpush2.msra.mxu0 %v588
    %747 = vmatprep.subr.mxu0 %v587
    %748 = vmatpush2.msra.mxu0 %v586
    %749 = vmatprep.subr.mxu0 %v585
    %750 = vmatpush2.msra.mxu0 %v584
    %751 = vmatprep.subr.mxu0 %v583
    %752 = vmatpush2.msra.mxu0 %v582
    %753 = vmatprep.subr.mxu0 %v581
    %754 = vmatpush2.msra.mxu0 %v580
    %755 = vmatprep.subr.mxu0 %v579
    %756 = vmatpush2.msra.mxu0 %v578
    %757 = vmatprep.mubr.f32.mxu0 %v481
    %758 = vmatmul.mubr.f32.gmra.mxu0 %v480
    %v759 = vpop.f32.mrf.mxu0
    %v760 = vadd.f32 %v689, %v759
    %v761 = vpop.f32.mrf.mxu0
    %v762 = vadd.f32 %v691, %v761
    %763 = vdwg.mxu0
    %v764 = vmax.f32 %v760, 0.0
    %v765 = vmax.f32 %v762, 0.0
    %v766 = vld [vmem:[#allocation13] sm:$0xff]
    %v767 = vld [vmem:[#allocation13 + $0x8] sm:$0xff]
    %v768 = vld [vmem:[#allocation13 + $0x10] sm:$0xff]
    %v769 = vld [vmem:[#allocation13 + $0x18] sm:$0xff]
    %v770 = vld [vmem:[#allocation13 + $0x20] sm:$0xff]
    %v771 = vld [vmem:[#allocation13 + $0x28] sm:$0xff]
    %v772 = vld [vmem:[#allocation13 + $0x30] sm:$0xff]
    %v773 = vld [vmem:[#allocation13 + $0x38] sm:$0xff]
    %v774 = vld [vmem:[#allocation13 + $0x40] sm:$0xff]
    %v775 = vld [vmem:[#allocation13 + $0x48] sm:$0xff]
    %v776 = vld [vmem:[#allocation13 + $0x50] sm:$0xff]
    %v777 = vld [vmem:[#allocation13 + $0x58] sm:$0xff]
    %v778 = vld [vmem:[#allocation13 + $0x60] sm:$0xff]
    %v779 = vld [vmem:[#allocation13 + $0x68] sm:$0xff]
    %v780 = vld [vmem:[#allocation13 + $0x70] sm:$0xff]
    %v781 = vld [vmem:[#allocation13 + $0x78] sm:$0xff]
    %v782 = vld [vmem:[#allocation13 + $0x80] sm:$0xff]
    %v783 = vld [vmem:[#allocation13 + $0x88] sm:$0xff]
    %v784 = vld [vmem:[#allocation13 + $0x90] sm:$0xff]
    %v785 = vld [vmem:[#allocation13 + $0x98] sm:$0xff]
    %v786 = vld [vmem:[#allocation13 + $0xa0] sm:$0xff]
    %v787 = vld [vmem:[#allocation13 + $0xa8] sm:$0xff]
    %v788 = vld [vmem:[#allocation13 + $0xb0] sm:$0xff]
    %v789 = vld [vmem:[#allocation13 + $0xb8] sm:$0xff]
    %v790 = vld [vmem:[#allocation13 + $0xc0] sm:$0xff]
    %v791 = vld [vmem:[#allocation13 + $0xc8] sm:$0xff]
    %v792 = vld [vmem:[#allocation13 + $0xd0] sm:$0xff]
    %v793 = vld [vmem:[#allocation13 + $0xd8] sm:$0xff]
    %v794 = vld [vmem:[#allocation13 + $0xe0] sm:$0xff]
    %v795 = vld [vmem:[#allocation13 + $0xe8] sm:$0xff]
    %v796 = vld [vmem:[#allocation13 + $0xf0] sm:$0xff]
    %v797 = vld [vmem:[#allocation13 + $0xf8] sm:$0xff]
    %v798 = vld [vmem:[#allocation15] sm:$0x1]
    %v800 = vlaneseq
    %v801 = vshrl.u32 %v800, 7
    %v802 = vsub.s32 0, %v801
    %v803 = vrot.slane %v798, %v802
    %805 = vmatprep.subr.mxu0 0.0
    %806 = vmatpush1.msra.mxu0 %v781
    %807 = vmatprep.subr.mxu0 0.0
    %808 = vmatpush1.msra.mxu0 %v780
    %809 = vmatprep.subr.mxu0 0.0
    %810 = vmatpush1.msra.mxu0 %v779
    %811 = vmatprep.subr.mxu0 0.0
    %812 = vmatpush1.msra.mxu0 %v778
    %813 = vmatprep.subr.mxu0 0.0
    %814 = vmatpush1.msra.mxu0 %v777
    %815 = vmatprep.subr.mxu0 0.0
    %816 = vmatpush1.msra.mxu0 %v776
    %817 = vmatprep.subr.mxu0 0.0
    %818 = vmatpush1.msra.mxu0 %v775
    %819 = vmatprep.subr.mxu0 0.0
    %820 = vmatpush1.msra.mxu0 %v774
    %821 = vmatprep.subr.mxu0 0.0
    %822 = vmatpush1.msra.mxu0 %v773
    %823 = vmatprep.subr.mxu0 0.0
    %824 = vmatpush1.msra.mxu0 %v772
    %825 = vmatprep.subr.mxu0 0.0
    %826 = vmatpush1.msra.mxu0 %v771
    %827 = vmatprep.subr.mxu0 0.0
    %828 = vmatpush1.msra.mxu0 %v770
    %829 = vmatprep.subr.mxu0 0.0
    %830 = vmatpush1.msra.mxu0 %v769
    %831 = vmatprep.subr.mxu0 0.0
    %832 = vmatpush1.msra.mxu0 %v768
    %833 = vmatprep.subr.mxu0 0.0
    %834 = vmatpush1.msra.mxu0 %v767
    %835 = vmatprep.subr.mxu0 0.0
    %836 = vmatpush1.msra.mxu0 %v766
    %837 = vmatprep.subr.mxu0 0.0
    %838 = vmatpush2.msra.mxu0 %v797
    %839 = vmatprep.subr.mxu0 0.0
    %840 = vmatpush2.msra.mxu0 %v796
    %841 = vmatprep.subr.mxu0 0.0
    %842 = vmatpush2.msra.mxu0 %v795
    %843 = vmatprep.subr.mxu0 0.0
    %844 = vmatpush2.msra.mxu0 %v794
    %845 = vmatprep.subr.mxu0 0.0
    %846 = vmatpush2.msra.mxu0 %v793
    %847 = vmatprep.subr.mxu0 0.0
    %848 = vmatpush2.msra.mxu0 %v792
    %849 = vmatprep.subr.mxu0 0.0
    %850 = vmatpush2.msra.mxu0 %v791
    %851 = vmatprep.subr.mxu0 0.0
    %852 = vmatpush2.msra.mxu0 %v790
    %853 = vmatprep.subr.mxu0 0.0
    %854 = vmatpush2.msra.mxu0 %v789
    %855 = vmatprep.subr.mxu0 0.0
    %856 = vmatpush2.msra.mxu0 %v788
    %857 = vmatprep.subr.mxu0 0.0
    %858 = vmatpush2.msra.mxu0 %v787
    %859 = vmatprep.subr.mxu0 0.0
    %860 = vmatpush2.msra.mxu0 %v786
    %861 = vmatprep.subr.mxu0 0.0
    %862 = vmatpush2.msra.mxu0 %v785
    %863 = vmatprep.subr.mxu0 0.0
    %864 = vmatpush2.msra.mxu0 %v784
    %865 = vmatprep.subr.mxu0 0.0
    %866 = vmatpush2.msra.mxu0 %v783
    %867 = vmatprep.subr.mxu0 0.0
    %868 = vmatpush2.msra.mxu0 %v782
    %869 = vmatprep.mubr.f32.mxu0 %v765
    %870 = vmatmul.mubr.f32.gmra.mxu0 %v764
    %v871 = vpop.f32.mrf.mxu0
    %v872 = vadd.f32 %v803, %v871
    %v873 = vpop.f32.mrf.mxu0
    %874 = vdwg.mxu0
    %v875 = vlaneseq
    %v876 = vand.u32 %v875, 127
    %v877 = vmax.f32 %v872, 0.0
    %vm878 = vcmp.ne.f32.partialorder %v872, %v872
    %v879 = vadd.f32 %v872, 0.0
    %v880 = vand.u32 2147483647, %v872
    %v881 = vsub.f32 0.0, %v880
    %v882 = vmul.f32 %v881, 1.442695
    %v883 = vpow.pop %v882
    %v884 = vadd.f32 %v883, 1.0
    %v885 = vlog2.pop %v884
    %v886 = vmul.f32 %v885, 0.6931472
    %v887 = vmul.f32 -0.5, %v883
    %v888 = vadd.f32 %v887, 1.0
    %v889 = vmul.f32 %v888, %v883
    %v890 = vand.u32 2147483647, %v883
    %vm891 = vcmp.lt.f32.partialorder %v890, 0.0004427343
    %v892 = vsel %vm891, %v889, %v886
    %v893 = vadd.f32 %v877, %v892
    %v894 = vsel %vm878, %v879, %v893
    %v895 = vtanh.pop %v872
    %v896 = vxor.u32 %v872, 2147483648
    %v897 = vmul.f32 %v896, 1.442695
    %v898 = vpow.pop %v897
    %v899 = vadd.f32 %v898, 1.0
    %v900 = vrcp.pop %v899
    %v901 = vmul.f32 1.0, %v900
    %vm902 = vcmp.ge.s32.totalorder %v876, 4
    %vm903 = vcmp.lt.s32.totalorder %v876, 12
    %vm904 = vmand %vm902, %vm903
    %v905 = vsel %vm904, %v894, %v872
    %vm906 = vcmp.eq.s32.totalorder %v876, 36
    %v907 = vsel %vm906, %v895, %v905
    %vm908 = vcmp.ge.s32.totalorder %v876, 37
    %vm909 = vcmp.lt.s32.totalorder %v876, 39
    %vm910 = vmand %vm908, %vm909
    %v911 = vsel %vm910, %v901, %v907
    %913 = vrot.lane.b32.xlu0 %v872, 124
    %v914 = vpop.permute.xlu0 %913
    %v916 = vmax.f32 %v872, %v914
    %917 = vrot.lane.b32.xlu0 %v872, 120
    %v918 = vpop.permute.xlu0 %917
    %v920 = vmax.f32 %v916, %v918
    %v921 = vsub.f32 %v872, %v920
    %v922 = vmul.f32 %v921, 1.442695
    %v923 = vpow.pop %v922
    %925 = vrot.lane.b32.xlu0 %v920, 4
    %v926 = vpop.permute.xlu0 %925
    %v928 = vsub.f32 %v872, %v926
    %v929 = vmul.f32 %v928, 1.442695
    %v930 = vpow.pop %v929
    %931 = vrot.lane.b32.xlu0 %v920, 8
    %v932 = vpop.permute.xlu0 %931
    %v934 = vsub.f32 %v872, %v932
    %v935 = vmul.f32 %v934, 1.442695
    %v936 = vpow.pop %v935
    %938 = vrot.lane.b32.xlu0 %v930, 124
    %v939 = vpop.permute.xlu0 %938
    %v941 = vadd.f32 %v923, %v939
    %943 = vrot.lane.b32.xlu0 %v936, 120
    %v944 = vpop.permute.xlu0 %943
    %v946 = vadd.f32 %v941, %v944
    %v947 = vrcp.pop %v946
    %v948 = vmul.f32 1.0, %v947
    %v949 = vmul.f32 %v923, %v948
    %951 = vrot.lane.b32.xlu0 %v948, 4
    %v952 = vpop.permute.xlu0 %951
    %v954 = vmul.f32 %v930, %v952
    %955 = vrot.lane.b32.xlu0 %v948, 8
    %v956 = vpop.permute.xlu0 %955
    %v958 = vmul.f32 %v936, %v956
    %960 = vrot.lane.b32.xlu0 %v949, 12
    %v961 = vpop.permute.xlu0 %960
    %964 = vrot.lane.b32.xlu0 %v954, 12
    %v965 = vpop.permute.xlu0 %964
    %968 = vrot.lane.b32.xlu0 %v958, 12
    %v969 = vpop.permute.xlu0 %968
    %vm971 = vcmask 195584
    %v972 = vsel %vm971, %v911, %v961
    %vm973 = vcmask 228352
    %v974 = vsel %vm973, %v972, %v965
    %v975 = vsel %vm152, %v974, %v969
    %vm976 = vcmask 293888
    %v977 = vsel %vm976, %v975, %v911
    %978 = vst [vmem:[%s11] sm:$0x3] %v977
    // Predicated region
    $region82: #{multi_task_forward.1} parent=1 // pred_check
      _
    $region83: #{multi_task_forward.1} parent=1 // pred_check_branch
      %980 = sbr.rel (0) target = $region85
    $region84: #{multi_task_forward.1} parent=1 // pred_region
      _
    $region85: #{multi_task_forward.1} parent=1 // pred_fallthru
      _
    // Predicated region
    $region86: #{multi_task_forward.1} parent=1 // pred_check
      _
    $region87: #{multi_task_forward.1} parent=1 // pred_check_branch
      %982 = sbr.rel (0) target = $region89
    $region88: #{multi_task_forward.1} parent=1 // pred_region
      _
    $region89: #{multi_task_forward.1} parent=1 // pred_fallthru
      _
    %983 = vsyncpa [#allocation3], 1
    %984 = vsyncpa [#allocation5], 1
    %985 = vsyncpa [#allocation8], 1
    %986 = vsyncpa [#allocation11], 1
    %987 = vsyncpa [#allocation14], 1

</llo_original>
